<compile_context>
chip_gen: v6e
topology: v6e:2x2x1
jax: 0.10.0
libtpu: 0.0.40
codegen_flags: <defaults>
</compile_context>

<pallas_src>
import jax
import jax.numpy as jnp
from jax.experimental import pallas as pl
from jax.experimental.pallas import tpu as pltpu

LANES = 128                 # lane (fast) axis width of a vreg
DEFAULT_BLOCK_ROWS = 1024   # 1024*128*4 B = 512 KiB per buffer -> tiny vs VMEM

# f_Na / f_Ca / f_K constants from the PyTorch module defaults.
NA = (0.0878, 113.68, 6.39, 8.98)
CA = (0.129, 69.62, -4.4, 4.25)
K_ = (2.23, 0.132, 16.74, 0.436)
CLAMP = 60.0


def sqgl_kernel(p_ref, x_ref, o_ref):
    """p_ref: SMEM (6,) = [alpha, beta, gamma, scale, atten, linscale].
    x_ref/o_ref: VMEM (block_rows, 128) tiles."""
    # learn=True path: parameters are forced positive before use.
    alpha = jnp.abs(p_ref[0])
    beta = jnp.abs(p_ref[1])
    gamma = jnp.abs(p_ref[2])
    scale = p_ref[3]
    atten = p_ref[4]
    linscale = p_ref[5]

    x = x_ref[...]
    xs = x * scale

    # f_Na / f_Ca share the same functional form.
    def gate(a, b, c, d):
        e = jnp.exp(jnp.clip(c - xs / d, -CLAMP, CLAMP))
        return -a * (xs - b) / (1.0 + e)

    f_na = gate(*NA)
    f_ca = gate(*CA)

    a_k, b_k, c_k, d_k = K_
    e_k = jnp.exp(jnp.clip(-b_k * (xs - c_k), -CLAMP, CLAMP))
    f_k = -a_k / (d_k + e_k)

    i_ion = alpha * f_na + beta * f_ca + gamma * f_k
    o_ref[...] = (x * linscale + i_ion) * atten


def sqgl_forward(x, params, block_rows=DEFAULT_BLOCK_ROWS):
    """Elementwise SQGL on an arbitrarily-shaped float array.

    params: (6,) float32 = [alpha, beta, gamma, scale, atten, linscale].
    """
    orig_shape = x.shape
    orig_dtype = x.dtype

    n = x.size
    rows = pl.cdiv(n, LANES)                       # rows of a (rows, 128) slab
    rows8 = pl.cdiv(rows, 8) * 8                   # sublane alignment
    br = max(8, (min(block_rows, rows8) // 8) * 8)  # tile rows, multiple of 8
    padded_rows = pl.cdiv(rows8, br) * br          # whole number of tiles
    total = padded_rows * LANES

    x_flat = jnp.ravel(x).astype(jnp.float32)
    x_pad = jnp.pad(x_flat, (0, total - n))        # guard partial last tile
    x2d = x_pad.reshape(padded_rows, LANES)        # lane-dense layout

    grid = (padded_rows // br,)

    out2d = pl.pallas_call(
        sqgl_kernel,
        out_shape=jax.ShapeDtypeStruct((padded_rows, LANES), jnp.float32),
        grid_spec=pltpu.PrefetchScalarGridSpec(
            num_scalar_prefetch=0,
            grid=grid,
            in_specs=[
                # all six scalar parameters in one SMEM array (no per-scalar DMA)
                pl.BlockSpec(memory_space=pltpu.MemorySpace.SMEM),
                pl.BlockSpec((br, LANES), lambda i: (i, 0)),
            ],
            out_specs=pl.BlockSpec((br, LANES), lambda i: (i, 0)),
        ),
        compiler_params=pltpu.CompilerParams(
            # independent tiles -> shard across v7x's 2 TensorCores; no-op on v5e/v6e
            dimension_semantics=("parallel",),
            vmem_limit_bytes=32 * 1024 * 1024,
        ),
    )(params, x2d)

    return out2d.reshape(-1)[:n].reshape(orig_shape).astype(orig_dtype)


def sqgl_ref(x, params):
    """Pure-JAX reference replicating the PyTorch forward."""
    alpha, beta, gamma, scale, atten, linscale = [params[i] for i in range(6)]
    alpha, beta, gamma = jnp.abs(alpha), jnp.abs(beta), jnp.abs(gamma)
    xs = x * scale

    def gate(a, b, c, d):
        return -a * (xs - b) / (1.0 + jnp.exp(jnp.clip(c - xs / d, -CLAMP, CLAMP)))

    f_na = gate(*NA)
    f_ca = gate(*CA)
    a_k, b_k, c_k, d_k = K_
    f_k = -a_k / (d_k + jnp.exp(jnp.clip(-b_k * (xs - c_k), -CLAMP, CLAMP)))
    i_ion = alpha * f_na + beta * f_ca + gamma * f_k
    return (x * linscale + i_ion) * atten


if __name__ == "__main__":
    key = jax.random.PRNGKey(0)
    x = jax.random.normal(key, (2, 4, 16, 16), jnp.float32)
    # [alpha, beta, gamma, scale, atten, linscale] — module defaults.
    # TODO(synk): the in-place Parameter.data = abs(...) mutation is a training-time
    # side effect; it is applied functionally (jnp.abs) inside the kernel instead.
    params = jnp.array([1.0, 0.6, 1.0, 1.0, 1.0, 1.0], jnp.float32)

    out = sqgl_forward(x, params)
    out = jax.block_until_ready(out)

    ref = sqgl_ref(x, params)
    assert out.shape == x.shape
    if not jnp.allclose(out, ref, rtol=1e-4, atol=1e-4):
        raise AssertionError("Pallas SQGL output does not match JAX reference")
    print("KERNEL_OK")
</pallas_src>

<mosaic_0001>
module attributes {stable_mosaic.version = 11 : i64} {
  func.func @sqgl_kernel(%arg0: i32, %arg1: memref<6xf32, #tpu.memory_space<smem>>, %arg2: memref<16x128xf32, #tpu.memory_space<vmem>>, %arg3: memref<16x128xf32, #tpu.memory_space<vmem>>) attributes {dimension_semantics = [#tpu.dimension_semantics<parallel>], iteration_bounds = array<i64: 1>, scalar_prefetch = 0 : i64, scratch_operands = 0 : i64, tpu.core_type = #tpu.core_type<tc>, window_params = [{transform_indices = @transform_0, window_bounds = array<i64: 6>}, {transform_indices = @transform_1, window_bounds = array<i64: 16, 128>}, {transform_indices = @transform_2, window_bounds = array<i64: 16, 128>}]} {
    %c0 = arith.constant 0 : index
    %0 = memref.load %arg1[%c0] : memref<6xf32, #tpu.memory_space<smem>>
    %1 = math.absf %0 : f32
    %c1 = arith.constant 1 : index
    %2 = memref.load %arg1[%c1] : memref<6xf32, #tpu.memory_space<smem>>
    %3 = math.absf %2 : f32
    %c2 = arith.constant 2 : index
    %4 = memref.load %arg1[%c2] : memref<6xf32, #tpu.memory_space<smem>>
    %5 = math.absf %4 : f32
    %c3 = arith.constant 3 : index
    %6 = memref.load %arg1[%c3] : memref<6xf32, #tpu.memory_space<smem>>
    %c4 = arith.constant 4 : index
    %7 = memref.load %arg1[%c4] : memref<6xf32, #tpu.memory_space<smem>>
    %c5 = arith.constant 5 : index
    %8 = memref.load %arg1[%c5] : memref<6xf32, #tpu.memory_space<smem>>
    %c0_0 = arith.constant 0 : index
    %c0_1 = arith.constant 0 : index
    %9 = vector.load %arg2[%c0_0, %c0_1] : memref<16x128xf32, #tpu.memory_space<vmem>>, vector<16x128xf32>
    %10 = vector.broadcast %6 : f32 to vector<16x128xf32>
    %11 = arith.mulf %9, %10 : vector<16x128xf32>
    %cst = arith.constant 8.980000e+00 : f32
    %12 = vector.broadcast %cst : f32 to vector<16x128xf32>
    %13 = arith.divf %11, %12 : vector<16x128xf32>
    %cst_2 = arith.constant 6.390000e+00 : f32
    %14 = vector.broadcast %cst_2 : f32 to vector<16x128xf32>
    %15 = arith.subf %14, %13 : vector<16x128xf32>
    %cst_3 = arith.constant -6.000000e+01 : f32
    %cst_4 = arith.constant 6.000000e+01 : f32
    %16 = vector.broadcast %cst_3 : f32 to vector<16x128xf32>
    %17 = arith.maximumf %16, %15 : vector<16x128xf32>
    %18 = vector.broadcast %cst_4 : f32 to vector<16x128xf32>
    %19 = arith.minimumf %18, %17 : vector<16x128xf32>
    %20 = math.exp %19 : vector<16x128xf32>
    %cst_5 = arith.constant 1.136800e+02 : f32
    %21 = vector.broadcast %cst_5 : f32 to vector<16x128xf32>
    %22 = arith.subf %11, %21 : vector<16x128xf32>
    %cst_6 = arith.constant -8.780000e-02 : f32
    %23 = vector.broadcast %cst_6 : f32 to vector<16x128xf32>
    %24 = arith.mulf %23, %22 : vector<16x128xf32>
    %cst_7 = arith.constant 1.000000e+00 : f32
    %25 = vector.broadcast %cst_7 : f32 to vector<16x128xf32>
    %26 = arith.addf %25, %20 : vector<16x128xf32>
    %27 = arith.divf %24, %26 : vector<16x128xf32>
    %cst_8 = arith.constant 4.250000e+00 : f32
    %28 = vector.broadcast %cst_8 : f32 to vector<16x128xf32>
    %29 = arith.divf %11, %28 : vector<16x128xf32>
    %cst_9 = arith.constant -4.400000e+00 : f32
    %30 = vector.broadcast %cst_9 : f32 to vector<16x128xf32>
    %31 = arith.subf %30, %29 : vector<16x128xf32>
    %cst_10 = arith.constant -6.000000e+01 : f32
    %cst_11 = arith.constant 6.000000e+01 : f32
    %32 = vector.broadcast %cst_10 : f32 to vector<16x128xf32>
    %33 = arith.maximumf %32, %31 : vector<16x128xf32>
    %34 = vector.broadcast %cst_11 : f32 to vector<16x128xf32>
    %35 = arith.minimumf %34, %33 : vector<16x128xf32>
    %36 = math.exp %35 : vector<16x128xf32>
    %cst_12 = arith.constant 6.962000e+01 : f32
    %37 = vector.broadcast %cst_12 : f32 to vector<16x128xf32>
    %38 = arith.subf %11, %37 : vector<16x128xf32>
    %cst_13 = arith.constant -1.290000e-01 : f32
    %39 = vector.broadcast %cst_13 : f32 to vector<16x128xf32>
    %40 = arith.mulf %39, %38 : vector<16x128xf32>
    %cst_14 = arith.constant 1.000000e+00 : f32
    %41 = vector.broadcast %cst_14 : f32 to vector<16x128xf32>
    %42 = arith.addf %41, %36 : vector<16x128xf32>
    %43 = arith.divf %40, %42 : vector<16x128xf32>
    %cst_15 = arith.constant 1.674000e+01 : f32
    %44 = vector.broadcast %cst_15 : f32 to vector<16x128xf32>
    %45 = arith.subf %11, %44 : vector<16x128xf32>
    %cst_16 = arith.constant -1.320000e-01 : f32
    %46 = vector.broadcast %cst_16 : f32 to vector<16x128xf32>
    %47 = arith.mulf %46, %45 : vector<16x128xf32>
    %cst_17 = arith.constant -6.000000e+01 : f32
    %cst_18 = arith.constant 6.000000e+01 : f32
    %48 = vector.broadcast %cst_17 : f32 to vector<16x128xf32>
    %49 = arith.maximumf %48, %47 : vector<16x128xf32>
    %50 = vector.broadcast %cst_18 : f32 to vector<16x128xf32>
    %51 = arith.minimumf %50, %49 : vector<16x128xf32>
    %52 = math.exp %51 : vector<16x128xf32>
    %cst_19 = arith.constant 4.360000e-01 : f32
    %53 = vector.broadcast %cst_19 : f32 to vector<16x128xf32>
    %54 = arith.addf %53, %52 : vector<16x128xf32>
    %cst_20 = arith.constant -2.230000e+00 : f32
    %55 = vector.broadcast %cst_20 : f32 to vector<16x128xf32>
    %56 = arith.divf %55, %54 : vector<16x128xf32>
    %57 = vector.broadcast %1 : f32 to vector<16x128xf32>
    %58 = arith.mulf %57, %27 : vector<16x128xf32>
    %59 = vector.broadcast %3 : f32 to vector<16x128xf32>
    %60 = arith.mulf %59, %43 : vector<16x128xf32>
    %61 = arith.addf %58, %60 : vector<16x128xf32>
    %62 = vector.broadcast %5 : f32 to vector<16x128xf32>
    %63 = arith.mulf %62, %56 : vector<16x128xf32>
    %64 = arith.addf %61, %63 : vector<16x128xf32>
    %65 = vector.broadcast %8 : f32 to vector<16x128xf32>
    %66 = arith.mulf %9, %65 : vector<16x128xf32>
    %67 = arith.addf %66, %64 : vector<16x128xf32>
    %68 = vector.broadcast %7 : f32 to vector<16x128xf32>
    %69 = arith.mulf %67, %68 : vector<16x128xf32>
    %c0_21 = arith.constant 0 : index
    %c0_22 = arith.constant 0 : index
    %70 = vector.load %arg3[%c0_21, %c0_22] : memref<16x128xf32, #tpu.memory_space<vmem>>, vector<16x128xf32>
    tpu.vector_store %arg3[%c0_21, %c0_22], %69 {strides = array<i32>} : memref<16x128xf32, #tpu.memory_space<vmem>>, vector<16x128xf32>,
    return
  }
  func.func @transform_0(%arg0: i32) -> i32 {
    %c0_i32 = arith.constant 0 : i32
    %c0_i32_0 = arith.constant 0 : i32
    return %c0_i32 : i32
  }
  func.func @transform_1(%arg0: i32) -> (i32, i32) {
    %c0_i32 = arith.constant 0 : i32
    %c0_i32_0 = arith.constant 0 : i32
    return %arg0, %c0_i32 : i32, i32
  }
  func.func @transform_2(%arg0: i32) -> (i32, i32) {
    %c0_i32 = arith.constant 0 : i32
    %c0_i32_0 = arith.constant 0 : i32
    return %arg0, %c0_i32 : i32, i32
  }
}

</mosaic_0001>

<llo_original>
// kernel: tpu_custom_call.1
$region0: #{tpu_custom_call.1}
  #allocation0 [shape = 'u32[]', space=smem, size = 0x4, offset = 0x4, fixed_abs, tag = 'smem constant byte address 0x4 - core index']
  #allocation1 [shape = 'u32[144,128]{1,0:T(1,128)}', space=vmem, size = 0x12000, scoped, tag = 'internal scratch']
  %s0 = inlined_call_operand.hbm [shape: f32[6], index: 0, kind: input, shape index: {}]
  %s1 = inlined_call_operand.hbm [shape: f32[16,128], index: 1, kind: input, shape index: {}]
  %s2 = inlined_call_operand.hbm [shape: f32[16,128], index: 2, kind: output, shape index: {}]
  %s3 = sld [smem:[#allocation0]]
  $region26: #{tpu_custom_call.1} parent=0
    _
  %s5 = ssub.s32 1, %s3
  %s6 = scalar_select 0, %s5, %s3
  $region1: #{tpu_custom_call.1} parent=0
    #allocation2 [shape = 'u8[512]{0}', space=smem, size = 0x200, scoped, tag = 'input window, operand 0, single buffered']
    #allocation3 [shape = 's32[1]{0}', space=sflag, size = 0x4, scoped, tag = 'scoped memory for tpu_custom_call.1']
    #allocation4 [shape = 's32[1]{0}', space=sflag, size = 0x4, scoped, tag = 'scoped memory for tpu_custom_call.1']
    #allocation5 [shape = 's32[1]{0}', space=sflag, size = 0x4, scoped, tag = 'scoped memory for tpu_custom_call.1']
    #allocation6 [shape = 'u8[8192]{0}', space=vmem, size = 0x2000, scoped, tag = 'input window, operand 1, single buffered']
    #allocation7 [shape = 'u8[8192]{0}', space=vmem, size = 0x2000, scoped, tag = 'output window, operand 0, single buffered']
    %7 = vsyncpa [#allocation5], 0
    %8 = vsyncpa [#allocation3], 0
    %9 = vsyncpa [#allocation4], 0
    // Predicated region
    $region2: #{tpu_custom_call.1} parent=1 // pred_check
      _
    $region3: #{tpu_custom_call.1} parent=1 // pred_check_branch
      %11 = sbr.rel (0) target = $region5
    $region4: #{tpu_custom_call.1} parent=1 // pred_region
      %s13 = ssub.s32 16, 16
      %14 = vsyncadd [#allocation5], %s13
      %17 = dma.hbm_to_smem %s0, 16, [#allocation2], [#allocation5]
    $region5: #{tpu_custom_call.1} parent=1 // pred_fallthru
      _
    // Predicated region
    $region6: #{tpu_custom_call.1} parent=1 // pred_check
      _
    $region7: #{tpu_custom_call.1} parent=1 // pred_check_branch
      %19 = sbr.rel (0) target = $region9
    $region8: #{tpu_custom_call.1} parent=1 // pred_region
      %s21 = ssub.s32 256, 256
      %22 = vsyncadd [#allocation3], %s21
      %s23 = sshll.u32 [#allocation6], 4
      %s24 = int_to_ptr.vmem [resolvable:$true] %s23
      %29 = dma.hbm_to_vmem [thread:$0]  %s1, 256, %s24, [#allocation3], 128, 128, 8
    $region9: #{tpu_custom_call.1} parent=1 // pred_fallthru
      _
    // Predicated region
    $region10: #{tpu_custom_call.1} parent=1 // pred_check
      _
    $region11: #{tpu_custom_call.1} parent=1 // pred_check_branch
      %31 = sbr.rel (0) target = $region13
    $region12: #{tpu_custom_call.1} parent=1 // pred_region
      %32 = dma.done [#allocation5], 16
    $region13: #{tpu_custom_call.1} parent=1 // pred_fallthru
      _
    // Predicated region
    $region14: #{tpu_custom_call.1} parent=1 // pred_check
      _
    $region15: #{tpu_custom_call.1} parent=1 // pred_check_branch
      %34 = sbr.rel (0) target = $region17
    $region16: #{tpu_custom_call.1} parent=1 // pred_region
      %35 = dma.done [#allocation3], 256
    $region17: #{tpu_custom_call.1} parent=1 // pred_fallthru
      _
    %36 = sfence
    %s37 = sld [smem:[#allocation2]]
    %s38 = sand.u32 2147483647, %s37
    %s39 = sld [smem:[#allocation2 + $0x1]]
    %s40 = sand.u32 2147483647, %s39
    %s41 = sld [smem:[#allocation2 + $0x2]]
    %s42 = sand.u32 2147483647, %s41
    %s43 = sld [smem:[#allocation2 + $0x3]]
    %s44 = sld [smem:[#allocation2 + $0x4]]
    %s45 = sld [smem:[#allocation2 + $0x5]]
    %v46 = vld [vmem:[#allocation6] sm:$0xff]
    %v47 = vld [vmem:[#allocation6 + $0x8] sm:$0xff]
    %v48 = vstv %s43
    %v49 = vmul.f32 %v46, %v48
    %v50 = vmul.f32 %v47, %v48
    %v51 = vrcp.pop 8.98
    %v52 = vmul.f32 %v49, %v51
    %v53 = vmul.f32 %v50, %v51
    %v54 = vsub.f32 6.39, %v52
    %v55 = vsub.f32 6.39, %v53
    %v56 = vmax.f32 %v54, -60.0
    %v57 = vmax.f32 %v55, -60.0
    %v58 = vmin.f32 %v56, 60.0
    %v59 = vmin.f32 %v57, 60.0
    %v60 = vmul.f32 %v58, 1.442695
    %v61 = vpow.pop %v60
    %v62 = vmul.f32 %v59, 1.442695
    %v63 = vpow.pop %v62
    %v64 = vsub.f32 %v49, 113.68
    %v65 = vsub.f32 %v50, 113.68
    %v66 = vmul.f32 %v64, -0.0878
    %v67 = vmul.f32 %v65, -0.0878
    %v68 = vadd.f32 %v61, 1.0
    %v69 = vadd.f32 %v63, 1.0
    %v70 = vrcp.pop %v68
    %v71 = vmul.f32 %v66, %v70
    %v72 = vrcp.pop %v69
    %v73 = vmul.f32 %v67, %v72
    %v74 = vrcp.pop 4.25
    %v75 = vmul.f32 %v49, %v74
    %v76 = vmul.f32 %v50, %v74
    %v77 = vsub.f32 -4.4, %v75
    %v78 = vsub.f32 -4.4, %v76
    %v79 = vmax.f32 %v77, -60.0
    %v80 = vmax.f32 %v78, -60.0
    %v81 = vmin.f32 %v79, 60.0
    %v82 = vmin.f32 %v80, 60.0
    %v83 = vmul.f32 %v81, 1.442695
    %v84 = vpow.pop %v83
    %v85 = vmul.f32 %v82, 1.442695
    %v86 = vpow.pop %v85
    %v87 = vsub.f32 %v49, 69.62
    %v88 = vsub.f32 %v50, 69.62
    %v89 = vmul.f32 %v87, -0.129
    %v90 = vmul.f32 %v88, -0.129
    %v91 = vadd.f32 %v84, 1.0
    %v92 = vadd.f32 %v86, 1.0
    %v93 = vrcp.pop %v91
    %v94 = vmul.f32 %v89, %v93
    %v95 = vrcp.pop %v92
    %v96 = vmul.f32 %v90, %v95
    %v97 = vsub.f32 %v49, 16.74
    %v98 = vsub.f32 %v50, 16.74
    %v99 = vmul.f32 %v97, -0.132
    %v100 = vmul.f32 %v98, -0.132
    %v101 = vmax.f32 %v99, -60.0
    %v102 = vmax.f32 %v100, -60.0
    %v103 = vmin.f32 %v101, 60.0
    %v104 = vmin.f32 %v102, 60.0
    %v105 = vmul.f32 %v103, 1.442695
    %v106 = vpow.pop %v105
    %v107 = vmul.f32 %v104, 1.442695
    %v108 = vpow.pop %v107
    %v109 = vadd.f32 %v106, 0.436
    %v110 = vadd.f32 %v108, 0.436
    %v111 = vrcp.pop %v109
    %v112 = vmul.f32 -2.23, %v111
    %v113 = vrcp.pop %v110
    %v114 = vmul.f32 -2.23, %v113
    %v115 = vstv %s38
    %v116 = vmul.f32 %v115, %v71
    %v117 = vmul.f32 %v115, %v73
    %v118 = vstv %s40
    %v119 = vmul.f32 %v118, %v94
    %v120 = vmul.f32 %v118, %v96
    %v121 = vadd.f32 %v116, %v119
    %v122 = vadd.f32 %v117, %v120
    %v123 = vstv %s42
    %v124 = vmul.f32 %v123, %v112
    %v125 = vmul.f32 %v123, %v114
    %v126 = vadd.f32 %v121, %v124
    %v127 = vadd.f32 %v122, %v125
    %v128 = vstv %s45
    %v129 = vmul.f32 %v46, %v128
    %v130 = vmul.f32 %v47, %v128
    %v131 = vadd.f32 %v129, %v126
    %v132 = vadd.f32 %v130, %v127
    %v133 = vstv %s44
    %v134 = vmul.f32 %v131, %v133
    %v135 = vmul.f32 %v132, %v133
    %136 = vst [vmem:[#allocation7] sm:$0xff] %v134
    %137 = vst [vmem:[#allocation7 + $0x8] sm:$0xff] %v135
    // Predicated region
    $region18: #{tpu_custom_call.1} parent=1 // pred_check
      _
    $region19: #{tpu_custom_call.1} parent=1 // pred_check_branch
      %139 = sbr.rel (0) target = $region21
    $region20: #{tpu_custom_call.1} parent=1 // pred_region
      %s141 = ssub.s32 256, 256
      %142 = vsyncadd [#allocation4], %s141
      %s143 = sshll.u32 [#allocation7], 4
      %s144 = int_to_ptr.vmem [resolvable:$true] %s143
      %149 = dma.vmem_to_hbm [thread:$0]  %s144, 256, %s2, [#allocation4], 128, 128, 8
    $region21: #{tpu_custom_call.1} parent=1 // pred_fallthru
      _
    // Predicated region
    $region22: #{tpu_custom_call.1} parent=1 // pred_check
      _
    $region23: #{tpu_custom_call.1} parent=1 // pred_check_branch
      %151 = sbr.rel (0) target = $region25
    $region24: #{tpu_custom_call.1} parent=1 // pred_region
      %152 = dma.done [#allocation4], 256
    $region25: #{tpu_custom_call.1} parent=1 // pred_fallthru
      _
    %153 = vsyncpa [#allocation3], 1
    %154 = vsyncpa [#allocation4], 1
    %155 = vsyncpa [#allocation5], 1

</llo_original>
